<compile_context>
chip_gen: v7x
topology: tpu7x:2x2x1
jax: 0.10.0
libtpu: 0.0.40
codegen_flags: <defaults>
</compile_context>

<pallas_src>
import functools

import jax
import jax.numpy as jnp
import numpy as np
from jax.experimental import pallas as pl
from jax.experimental.pallas import tpu as pltpu

# ---- Size gate -------------------------------------------------------------
# Below this element count a K-way elementwise add is exactly what XLA fuses
# well; the pallas_call dispatch + lost fusion costs more than the sum.
_PALLAS_MIN_ELEMS = 64 * 1024

# ---- Tiling ----------------------------------------------------------------
_LANE_COLS = 512            # lane-dense column count (multiple of 128)
_MAX_TILE_BYTES = 2 << 20   # per-input per-buffer tile (~HBM-roofline sweet spot)
_VMEM_BUDGET = 32 << 20     # target total for double-buffered pipeline buffers
_VMEM_CEILING = 40 << 20    # stay well under v7x's 64 MiB physical VMEM
_MIN_GRID_STEPS = 8         # keep >= 2 (ideally 4-8) steps for v7x's two TCs


def _make_sum_kernel(num_inputs, acc_dtype):
    """Kernel summing `num_inputs` equal-shaped (TM, C) tiles elementwise."""

    def kernel(*refs):
        out_ref = refs[-1]
        acc = refs[0][...].astype(acc_dtype)
        for r in refs[1:num_inputs]:
            acc = acc + r[...].astype(acc_dtype)
        out_ref[...] = acc.astype(out_ref.dtype)

    return kernel


def _sum_losses_pallas(values, base_shape, base_dtype):
    k = len(values)
    n = int(np.prod(base_shape)) if base_shape else 1
    itemsize = jnp.dtype(base_dtype).itemsize

    c = _LANE_COLS
    r = n // c                      # full lane-dense rows handled by the kernel
    n_main = r * c
    if r == 0:
        # Too small to form even one lane-dense row (shouldn't happen past the
        # size gate, but stay safe).
        return functools.reduce(jnp.add, values)

    # Sublane granularity: 8 rows for 4-byte dtypes, 16 for bf16/fp16, 32 for int8.
    sub_mult = max(8, (8 * 4) // itemsize)

    # Per-input per-buffer tile derived from the VMEM budget:
    #   total VMEM ~= 2 buffers x (K inputs + 1 output) x tile_bytes.
    tile_bytes = min(_MAX_TILE_BYTES, _VMEM_BUDGET // (2 * (k + 1)))
    row_bytes = c * itemsize
    if r <= sub_mult:
        tm = r                                      # single block == full row extent
    else:
        tm = max(1, tile_bytes // row_bytes)
        tm = min(tm, pl.cdiv(r, _MIN_GRID_STEPS))   # keep the grid sharded on v7x
        tm = max(sub_mult, (tm // sub_mult) * sub_mult)
        tm = min(tm, (r // sub_mult) * sub_mult)
    grid = (pl.cdiv(r, tm),)

    # Accumulate low-precision float losses in f32 (VPU cast is free filler
    # in this DMA-bound regime).
    if jnp.issubdtype(base_dtype, jnp.floating) and itemsize < 4:
        acc_dtype = jnp.float32
    else:
        acc_dtype = base_dtype

    # Flatten (metadata-only) and split off the tail that doesn't fill a row.
    flat = [jnp.reshape(v, (-1,)) for v in values]
    main = [jnp.reshape(f[:n_main], (r, c)) for f in flat]

    buf_bytes = 2 * (k + 1) * tm * c * itemsize
    vmem_limit = int(min(_VMEM_CEILING, max(16 << 20, buf_bytes + (8 << 20))))

    cost = pl.CostEstimate(
        flops=max(k - 1, 1) * n_main,
        transcendentals=0,
        bytes_accessed=(k + 1) * n_main * itemsize,
    )

    main_out = pl.pallas_call(
        _make_sum_kernel(k, acc_dtype),
        out_shape=jax.ShapeDtypeStruct((r, c), base_dtype),
        grid_spec=pltpu.PrefetchScalarGridSpec(
            num_scalar_prefetch=0,
            grid=grid,
            in_specs=[pl.BlockSpec((tm, c), lambda i: (i, 0)) for _ in range(k)],
            out_specs=pl.BlockSpec((tm, c), lambda i: (i, 0)),
        ),
        compiler_params=pltpu.CompilerParams(
            dimension_semantics=("parallel",),
            vmem_limit_bytes=vmem_limit,
        ),
        cost_estimate=cost,
    )(*main)

    out_flat = jnp.reshape(main_out, (-1,))
    if n_main < n:
        tail = functools.reduce(jnp.add, [f[n_main:] for f in flat])
        out_flat = jnp.concatenate([out_flat, tail])
    return jnp.reshape(out_flat, base_shape)


def detection_loss_wrapper(loss_dict):
    """JAX/Pallas equivalent of DetectionLossWrapper.forward.

    Args:
        loss_dict: dict[str, array-like] of loss terms.

    Returns:
        Elementwise sum of the dict values.
    """
    values = [jnp.asarray(v) for v in loss_dict.values()]
    if not values:
        raise ValueError("loss_dict must be non-empty")

    base_shape = values[0].shape
    base_dtype = values[0].dtype
    uniform = all(v.shape == base_shape and v.dtype == base_dtype for v in values)
    n = int(np.prod(base_shape)) if base_shape else 1

    if (not uniform) or len(values) == 1 or n < _PALLAS_MIN_ELEMS:
        # Scalar / small losses (the typical detection case) or mismatched
        # shapes/dtypes (PyTorch would broadcast): a plain-JAX add tree is
        # cheaper than a pallas_call dispatch and fuses with neighbors.
        return functools.reduce(jnp.add, values)

    return _sum_losses_pallas(values, base_shape, base_dtype)


if __name__ == "__main__":
    key = jax.random.PRNGKey(0)
    names = ["loss_cls", "loss_box_reg", "loss_objectness", "loss_rpn_box_reg"]
    keys = jax.random.split(key, 16)

    # Case 1: typical detection losses — 4 scalars (size-gated pure-JAX path).
    scalar_losses = {
        name: jax.random.uniform(keys[i], (), dtype=jnp.float32)
        for i, name in enumerate(names)
    }
    out_scalar = jax.block_until_ready(detection_loss_wrapper(scalar_losses))
    exp_scalar = functools.reduce(jnp.add, list(scalar_losses.values()))
    np.testing.assert_allclose(np.asarray(out_scalar), np.asarray(exp_scalar), rtol=1e-6)

    # Case 2: small per-element loss maps (2,4,16,16) — below the gate, pure JAX.
    small_shape = (2, 4, 16, 16)
    small_losses = {
        name: jax.random.uniform(keys[4 + i], small_shape, dtype=jnp.float32)
        for i, name in enumerate(names)
    }
    out_small = jax.block_until_ready(detection_loss_wrapper(small_losses))
    exp_small = functools.reduce(jnp.add, list(small_losses.values()))
    np.testing.assert_allclose(np.asarray(out_small), np.asarray(exp_small),
                               rtol=1e-6, atol=1e-6)

    # Case 3: larger loss maps — exercises the Pallas kernel path including the
    # plain-JAX tail (n = 2*4*130*130 = 135200; 135200 % 512 = 32).
    map_shape = (2, 4, 130, 130)
    map_losses = {
        name: jax.random.uniform(keys[8 + i], map_shape, dtype=jnp.float32)
        for i, name in enumerate(names)
    }
    out_map = jax.block_until_ready(detection_loss_wrapper(map_losses))
    exp_map = functools.reduce(jnp.add, list(map_losses.values()))
    np.testing.assert_allclose(np.asarray(out_map), np.asarray(exp_map),
                               rtol=1e-6, atol=1e-6)

    # Case 4: bf16 loss maps — exercises f32 accumulation + cast-back.
    bf_shape = (2, 4, 128, 128)
    bf_losses = {
        name: jax.random.uniform(keys[12 + i], bf_shape, dtype=jnp.float32
                                 ).astype(jnp.bfloat16)
        for i, name in enumerate(names)
    }
    out_bf = jax.block_until_ready(detection_loss_wrapper(bf_losses))
    exp_bf = functools.reduce(
        jnp.add, [v.astype(jnp.float32) for v in bf_losses.values()]
    ).astype(jnp.bfloat16)
    np.testing.assert_allclose(np.asarray(out_bf.astype(jnp.float32)),
                               np.asarray(exp_bf.astype(jnp.float32)),
                               rtol=5e-2, atol=5e-2)

    print("KERNEL_OK")
</pallas_src>

<mosaic_0001>
module attributes {stable_mosaic.version = 11 : i64} {
  func.func @kernel(%arg0: i32, %arg1: memref<32x512xf32, #tpu.memory_space<vmem>>, %arg2: memref<32x512xf32, #tpu.memory_space<vmem>>, %arg3: memref<32x512xf32, #tpu.memory_space<vmem>>, %arg4: memref<32x512xf32, #tpu.memory_space<vmem>>, %arg5: memref<32x512xf32, #tpu.memory_space<vmem>>) attributes {dimension_semantics = [#tpu.dimension_semantics<parallel>], iteration_bounds = array<i64: 9>, scalar_prefetch = 0 : i64, scratch_operands = 0 : i64, tpu.core_type = #tpu.core_type<tc>, window_params = [{transform_indices = @transform_0, window_bounds = array<i64: 32, 512>}, {transform_indices = @transform_1, window_bounds = array<i64: 32, 512>}, {transform_indices = @transform_2, window_bounds = array<i64: 32, 512>}, {transform_indices = @transform_3, window_bounds = array<i64: 32, 512>}, {transform_indices = @transform_4, window_bounds = array<i64: 32, 512>}]} {
    %c0 = arith.constant 0 : index
    %c0_0 = arith.constant 0 : index
    %0 = vector.load %arg1[%c0, %c0_0] : memref<32x512xf32, #tpu.memory_space<vmem>>, vector<32x512xf32>
    %c0_1 = arith.constant 0 : index
    %c0_2 = arith.constant 0 : index
    %1 = vector.load %arg2[%c0_1, %c0_2] : memref<32x512xf32, #tpu.memory_space<vmem>>, vector<32x512xf32>
    %2 = arith.addf %0, %1 : vector<32x512xf32>
    %c0_3 = arith.constant 0 : index
    %c0_4 = arith.constant 0 : index
    %3 = vector.load %arg3[%c0_3, %c0_4] : memref<32x512xf32, #tpu.memory_space<vmem>>, vector<32x512xf32>
    %4 = arith.addf %2, %3 : vector<32x512xf32>
    %c0_5 = arith.constant 0 : index
    %c0_6 = arith.constant 0 : index
    %5 = vector.load %arg4[%c0_5, %c0_6] : memref<32x512xf32, #tpu.memory_space<vmem>>, vector<32x512xf32>
    %6 = arith.addf %4, %5 : vector<32x512xf32>
    %c0_7 = arith.constant 0 : index
    %c0_8 = arith.constant 0 : index
    %7 = vector.load %arg5[%c0_7, %c0_8] : memref<32x512xf32, #tpu.memory_space<vmem>>, vector<32x512xf32>
    tpu.vector_store %arg5[%c0_7, %c0_8], %6 {strides = array<i32>} : memref<32x512xf32, #tpu.memory_space<vmem>>, vector<32x512xf32>,
    return
  }
  func.func @transform_0(%arg0: i32) -> (i32, i32) {
    %c0_i32 = arith.constant 0 : i32
    %c0_i32_0 = arith.constant 0 : i32
    return %arg0, %c0_i32 : i32, i32
  }
  func.func @transform_1(%arg0: i32) -> (i32, i32) {
    %c0_i32 = arith.constant 0 : i32
    %c0_i32_0 = arith.constant 0 : i32
    return %arg0, %c0_i32 : i32, i32
  }
  func.func @transform_2(%arg0: i32) -> (i32, i32) {
    %c0_i32 = arith.constant 0 : i32
    %c0_i32_0 = arith.constant 0 : i32
    return %arg0, %c0_i32 : i32, i32
  }
  func.func @transform_3(%arg0: i32) -> (i32, i32) {
    %c0_i32 = arith.constant 0 : i32
    %c0_i32_0 = arith.constant 0 : i32
    return %arg0, %c0_i32 : i32, i32
  }
  func.func @transform_4(%arg0: i32) -> (i32, i32) {
    %c0_i32 = arith.constant 0 : i32
    %c0_i32_0 = arith.constant 0 : i32
    return %arg0, %c0_i32 : i32, i32
  }
}

</mosaic_0001>

<llo_original>
// kernel: tpu_custom_call.1
$region0: #{tpu_custom_call.1}
  #allocation0 [shape = 'u32[]', space=smem, size = 0x4, offset = 0x4, fixed_abs, tag = 'smem constant byte address 0x4 - core index']
  #allocation1 [shape = 'u32[144,128]{1,0:T(1,128)}', space=vmem, size = 0x12000, scoped, tag = 'internal scratch']
  %s0 = inlined_call_operand.hbm [shape: f32[264,512], index: 0, kind: input, shape index: {}]
  %s1 = inlined_call_operand.hbm [shape: f32[264,512], index: 1, kind: input, shape index: {}]
  %s2 = inlined_call_operand.hbm [shape: f32[264,512], index: 2, kind: input, shape index: {}]
  %s3 = inlined_call_operand.hbm [shape: f32[264,512], index: 3, kind: input, shape index: {}]
  %s4 = inlined_call_operand.hbm [shape: f32[264,512], index: 4, kind: output, shape index: {}]
  %s5 = sld [smem:[#allocation0]]
  $region65: #{tpu_custom_call.1} parent=0
    _
  %s7 = ssub.s32 1, %s5
  %s8 = scalar_select 0, %s7, %s5
  $region1: #{tpu_custom_call.1} parent=0
    #allocation2 [shape = 'u8[131072]{0}', space=vmem, size = 0x20000, scoped, tag = 'input window, operand 0']
    #allocation3 [shape = 's32[2]{0}', space=sflag, size = 0x8, scoped, tag = 'scoped memory for tpu_custom_call.1']
    #allocation4 [shape = 's32[2]{0}', space=sflag, size = 0x8, scoped, tag = 'scoped memory for tpu_custom_call.1']
    #allocation5 [shape = 'u8[131072]{0}', space=vmem, size = 0x20000, scoped, tag = 'input window, operand 1']
    #allocation6 [shape = 's32[2]{0}', space=sflag, size = 0x8, scoped, tag = 'scoped memory for tpu_custom_call.1']
    #allocation7 [shape = 'u8[131072]{0}', space=vmem, size = 0x20000, scoped, tag = 'input window, operand 2']
    #allocation8 [shape = 'u8[131072]{0}', space=vmem, size = 0x20000, scoped, tag = 'input window, operand 3']
    #allocation9 [shape = 's32[2]{0}', space=sflag, size = 0x8, scoped, tag = 'scoped memory for tpu_custom_call.1']
    #allocation10 [shape = 'u8[131072]{0}', space=vmem, size = 0x20000, scoped, tag = 'output window, operand 0']
    %9 = vsyncpa [#allocation3], 0
    %s10 = scalar_lea.sflag [#allocation3], 1
    %11 = vsyncpa %s10, 0
    %12 = vsyncpa [#allocation6], 0
    %s13 = scalar_lea.sflag [#allocation6], 1
    %14 = vsyncpa %s13, 0
    %15 = vsyncpa [#allocation9], 0
    %s16 = scalar_lea.sflag [#allocation9], 1
    %17 = vsyncpa %s16, 0
    %18 = vsyncpa [#allocation4], 0
    %s19 = scalar_lea.sflag [#allocation4], 1
    %20 = vsyncpa %s19, 0
    loop: start=0, step=1, limit=11
    $region2: #{tpu_custom_call.1} parent=1 // loop_pre_header
      _
    $region3: #{tpu_custom_call.1} parent=1 // loop_header
      %s22 = sphi 0, %s26
      %p23 = scmp.ge.s32.totalorder %s22, 11
      %s32 = sphi 0, %s34
      %s35 = sphi 0, %s32
      %s36 = sphi 0, %s35
      %s52 = sphi 0, %s36
      %s58 = sphi 0, %s60
      %s61 = sphi 0, %s58
      %s62 = sphi 0, %s61
      %s78 = sphi 0, %s62
      %s84 = sphi 0, %s86
      %s87 = sphi 0, %s84
      %s88 = sphi 0, %s87
      %s104 = sphi 0, %s88
      %s110 = sphi 0, %s112
      %s113 = sphi 0, %s110
      %s114 = sphi 0, %s113
      %s130 = sphi 0, %s114
      %s136 = sphi 0, %s138
      %s139 = sphi 0, %s136
      %s140 = sphi 0, %s139
      %s156 = sphi 0, %s140
    $region4: #{tpu_custom_call.1} parent=1 // loop_header_branch
      %25 = sbr.rel (%p23) target = $region8
    $region5: #{tpu_custom_call.1} parent=1 // loop_body
      %s27 = ssub.s32 %s22, 1
      %s28 = ssub.s32 %s22, 2
      %s29 = sadd.s32 %s22, 1
      %s30 = ssub.s32 %s22, %s29
      %p31 = scmp.eq.s32.totalorder %s30, 0
      %s33 = sadd.s32 %s32, 1
      %s34 = scalar_select %p31, %s32, %s33
      %p37 = pneg %p31
      %p38 = scmp.eq.s32.totalorder %s22, 8
      %p39 = por %p37, %p38
      %p40 = scmp.ne.s32.totalorder %s32, %s35
      %p41 = scmp.eq.s32.totalorder %s22, 0
      %p42 = por %p40, %p41
      %p43 = scmp.ne.s32.totalorder %s32, %s35
      %p44 = scmp.eq.s32.totalorder %s27, 8
      %p45 = por %p43, %p44
      %p46 = scmp.ne.s32.totalorder %s35, %s36
      %p47 = scmp.eq.s32.totalorder %s27, 0
      %p48 = por %p46, %p47
      %p49 = scmp.ne.s32.totalorder %s35, %s36
      %p50 = scmp.eq.s32.totalorder %s28, 8
      %p51 = por %p49, %p50
      %p53 = scmp.ne.s32.totalorder %s36, %s52
      %p54 = scmp.eq.s32.totalorder %s28, 0
      %p55 = por %p53, %p54
      %s56 = ssub.s32 %s22, %s29
      %p57 = scmp.eq.s32.totalorder %s56, 0
      %s59 = sadd.s32 %s58, 1
      %s60 = scalar_select %p57, %s58, %s59
      %p63 = pneg %p57
      %p64 = scmp.eq.s32.totalorder %s22, 8
      %p65 = por %p63, %p64
      %p66 = scmp.ne.s32.totalorder %s58, %s61
      %p67 = scmp.eq.s32.totalorder %s22, 0
      %p68 = por %p66, %p67
      %p69 = scmp.ne.s32.totalorder %s58, %s61
      %p70 = scmp.eq.s32.totalorder %s27, 8
      %p71 = por %p69, %p70
      %p72 = scmp.ne.s32.totalorder %s61, %s62
      %p73 = scmp.eq.s32.totalorder %s27, 0
      %p74 = por %p72, %p73
      %p75 = scmp.ne.s32.totalorder %s61, %s62
      %p76 = scmp.eq.s32.totalorder %s28, 8
      %p77 = por %p75, %p76
      %p79 = scmp.ne.s32.totalorder %s62, %s78
      %p80 = scmp.eq.s32.totalorder %s28, 0
      %p81 = por %p79, %p80
      %s82 = ssub.s32 %s22, %s29
      %p83 = scmp.eq.s32.totalorder %s82, 0
      %s85 = sadd.s32 %s84, 1
      %s86 = scalar_select %p83, %s84, %s85
      %p89 = pneg %p83
      %p90 = scmp.eq.s32.totalorder %s22, 8
      %p91 = por %p89, %p90
      %p92 = scmp.ne.s32.totalorder %s84, %s87
      %p93 = scmp.eq.s32.totalorder %s22, 0
      %p94 = por %p92, %p93
      %p95 = scmp.ne.s32.totalorder %s84, %s87
      %p96 = scmp.eq.s32.totalorder %s27, 8
      %p97 = por %p95, %p96
      %p98 = scmp.ne.s32.totalorder %s87, %s88
      %p99 = scmp.eq.s32.totalorder %s27, 0
      %p100 = por %p98, %p99
      %p101 = scmp.ne.s32.totalorder %s87, %s88
      %p102 = scmp.eq.s32.totalorder %s28, 8
      %p103 = por %p101, %p102
      %p105 = scmp.ne.s32.totalorder %s88, %s104
      %p106 = scmp.eq.s32.totalorder %s28, 0
      %p107 = por %p105, %p106
      %s108 = ssub.s32 %s22, %s29
      %p109 = scmp.eq.s32.totalorder %s108, 0
      %s111 = sadd.s32 %s110, 1
      %s112 = scalar_select %p109, %s110, %s111
      %p115 = pneg %p109
      %p116 = scmp.eq.s32.totalorder %s22, 8
      %p117 = por %p115, %p116
      %p118 = scmp.ne.s32.totalorder %s110, %s113
      %p119 = scmp.eq.s32.totalorder %s22, 0
      %p120 = por %p118, %p119
      %p121 = scmp.ne.s32.totalorder %s110, %s113
      %p122 = scmp.eq.s32.totalorder %s27, 8
      %p123 = por %p121, %p122
      %p124 = scmp.ne.s32.totalorder %s113, %s114
      %p125 = scmp.eq.s32.totalorder %s27, 0
      %p126 = por %p124, %p125
      %p127 = scmp.ne.s32.totalorder %s113, %s114
      %p128 = scmp.eq.s32.totalorder %s28, 8
      %p129 = por %p127, %p128
      %p131 = scmp.ne.s32.totalorder %s114, %s130
      %p132 = scmp.eq.s32.totalorder %s28, 0
      %p133 = por %p131, %p132
      %s134 = ssub.s32 %s22, %s29
      %p135 = scmp.eq.s32.totalorder %s134, 0
      %s137 = sadd.s32 %s136, 1
      %s138 = scalar_select %p135, %s136, %s137
      %p141 = pneg %p135
      %p142 = scmp.eq.s32.totalorder %s22, 8
      %p143 = por %p141, %p142
      %p144 = scmp.ne.s32.totalorder %s136, %s139
      %p145 = scmp.eq.s32.totalorder %s22, 0
      %p146 = por %p144, %p145
      %p147 = scmp.ne.s32.totalorder %s136, %s139
      %p148 = scmp.eq.s32.totalorder %s27, 8
      %p149 = por %p147, %p148
      %p150 = scmp.ne.s32.totalorder %s139, %s140
      %p151 = scmp.eq.s32.totalorder %s27, 0
      %p152 = por %p150, %p151
      %p153 = scmp.ne.s32.totalorder %s139, %s140
      %p154 = scmp.eq.s32.totalorder %s28, 8
      %p155 = por %p153, %p154
      %p157 = scmp.ne.s32.totalorder %s140, %s156
      %p158 = scmp.eq.s32.totalorder %s28, 0
      %p159 = por %p157, %p158
      %p160 = scmp.le.s32.totalorder 1, %s22
      %p161 = scmp.lt.s32.totalorder %s22, 10
      %p162 = pnand %p160, %p161
      %p163 = pneg %p162
      // Predicated region
      $region9: #{tpu_custom_call.1} parent=5 // pred_check
        _
      $region10: #{tpu_custom_call.1} parent=5 // pred_check_branch
        %165 = sbr.rel (%p162) target = $region12
      $region11: #{tpu_custom_call.1} parent=5 // pred_region
        %s166 = ssub.s32 %s22, 1
      $region12: #{tpu_custom_call.1} parent=5 // pred_fallthru
        _
      %p167 = scmp.lt.s32.totalorder %s22, 9
      // Predicated region
      $region13: #{tpu_custom_call.1} parent=5 // pred_check
        %p168 = pneg %p167
      $region14: #{tpu_custom_call.1} parent=5 // pred_check_branch
        %170 = sbr.rel (%p168) target = $region16
      $region15: #{tpu_custom_call.1} parent=5 // pred_region
        // Predicated region
        $region17: #{tpu_custom_call.1} parent=15 // pred_check
          %p171 = pneg %p42
        $region18: #{tpu_custom_call.1} parent=15 // pred_check_branch
          %173 = sbr.rel (%p171) target = $region20
        $region19: #{tpu_custom_call.1} parent=15 // pred_region
          %s174 = sand.u32 %s32, 1
          %s175 = scalar_lea.sflag [#allocation3], %s174
          %s176 = sand.u32 %s32, 1
          %s177 = smul.addr %s176, 128
          %s178 = scalar_lea.vmem [#allocation2], %s177
          %s179 = smul.u32 4, %s22
          %s180 = ssub.s32 33, %s179
          %p181 = scmp.lt.s32.totalorder %s180, 4
          %s182 = scalar_select %p181, %s180, 4
          %s183 = smul.u32 128, %s182
          %s184 = smul.u32 %s183, 4
          %s186 = ssub.s32 2048, %s184
          %187 = vsyncadd %s175, %s186
          %p188 = scmp.ne.s32.totalorder 0, %s184
          %s189 = smul.addr %s179, 4
          %s190 = smul.addr %s189, 128
          %s191 = scalar_lea.hbm %s0, %s190
          %s192 = smul.u32 32, %s182
          %s193 = sshll.u32 %s178, 4
          %s194 = int_to_ptr.vmem [resolvable:$true] %s193
          %s195 = sshll.u32 %s192, 4
          %199 = dma.hbm_to_vmem [thread:$0]  (%p188), %s191, %s195, %s194, %s175, 512, 512, 32
        $region20: #{tpu_custom_call.1} parent=15 // pred_fallthru
          _
        // Predicated region
        $region21: #{tpu_custom_call.1} parent=15 // pred_check
          %p200 = pneg %p68
        $region22: #{tpu_custom_call.1} parent=15 // pred_check_branch
          %202 = sbr.rel (%p200) target = $region24
        $region23: #{tpu_custom_call.1} parent=15 // pred_region
          %s203 = sand.u32 %s22, 1
          %s204 = scalar_lea.sflag [#allocation6], %s203
          %s205 = sand.u32 %s58, 1
          %s206 = smul.addr %s205, 128
          %s207 = scalar_lea.vmem [#allocation5], %s206
          %s208 = smul.u32 4, %s22
          %s209 = ssub.s32 33, %s208
          %p210 = scmp.lt.s32.totalorder %s209, 4
          %s211 = scalar_select %p210, %s209, 4
          %s212 = smul.u32 128, %s211
          %s213 = smul.u32 %s212, 4
          %s215 = ssub.s32 2048, %s213
          %216 = vsyncadd %s204, %s215
          %p217 = scmp.ne.s32.totalorder 0, %s213
          %s218 = smul.addr %s208, 4
          %s219 = smul.addr %s218, 128
          %s220 = scalar_lea.hbm %s1, %s219
          %s221 = smul.u32 32, %s211
          %s222 = sshll.u32 %s207, 4
          %s223 = int_to_ptr.vmem [resolvable:$true] %s222
          %s224 = sshll.u32 %s221, 4
          %228 = dma.hbm_to_vmem [thread:$0]  (%p217), %s220, %s224, %s223, %s204, 512, 512, 32
        $region24: #{tpu_custom_call.1} parent=15 // pred_fallthru
          _
        // Predicated region
        $region25: #{tpu_custom_call.1} parent=15 // pred_check
          %p229 = pneg %p94
        $region26: #{tpu_custom_call.1} parent=15 // pred_check_branch
          %231 = sbr.rel (%p229) target = $region28
        $region27: #{tpu_custom_call.1} parent=15 // pred_region
          %s232 = sand.u32 %s22, 1
          %s233 = scalar_lea.sflag [#allocation6], %s232
          %s234 = sand.u32 %s84, 1
          %s235 = smul.addr %s234, 128
          %s236 = scalar_lea.vmem [#allocation7], %s235
          %s237 = smul.u32 4, %s22
          %s238 = ssub.s32 33, %s237
          %p239 = scmp.lt.s32.totalorder %s238, 4
          %s240 = scalar_select %p239, %s238, 4
          %s241 = smul.u32 128, %s240
          %s242 = smul.u32 %s241, 4
          %s244 = ssub.s32 2048, %s242
          %245 = vsyncadd %s233, %s244
          %p246 = scmp.ne.s32.totalorder 0, %s242
          %s247 = smul.addr %s237, 4
          %s248 = smul.addr %s247, 128
          %s249 = scalar_lea.hbm %s2, %s248
          %s250 = smul.u32 32, %s240
          %s251 = sshll.u32 %s236, 4
          %s252 = int_to_ptr.vmem [resolvable:$true] %s251
          %s253 = sshll.u32 %s250, 4
          %257 = dma.hbm_to_vmem [thread:$0]  (%p246), %s249, %s253, %s252, %s233, 512, 512, 32
        $region28: #{tpu_custom_call.1} parent=15 // pred_fallthru
          _
        // Predicated region
        $region29: #{tpu_custom_call.1} parent=15 // pred_check
          %p258 = pneg %p120
        $region30: #{tpu_custom_call.1} parent=15 // pred_check_branch
          %260 = sbr.rel (%p258) target = $region32
        $region31: #{tpu_custom_call.1} parent=15 // pred_region
          %s261 = sand.u32 %s110, 1
          %s262 = scalar_lea.sflag [#allocation9], %s261
          %s263 = sand.u32 %s110, 1
          %s264 = smul.addr %s263, 128
          %s265 = scalar_lea.vmem [#allocation8], %s264
          %s266 = smul.u32 4, %s22
          %s267 = ssub.s32 33, %s266
          %p268 = scmp.lt.s32.totalorder %s267, 4
          %s269 = scalar_select %p268, %s267, 4
          %s270 = smul.u32 128, %s269
          %s271 = smul.u32 %s270, 4
          %s273 = ssub.s32 2048, %s271
          %274 = vsyncadd %s262, %s273
          %p275 = scmp.ne.s32.totalorder 0, %s271
          %s276 = smul.addr %s266, 4
          %s277 = smul.addr %s276, 128
          %s278 = scalar_lea.hbm %s3, %s277
          %s279 = smul.u32 32, %s269
          %s280 = sshll.u32 %s265, 4
          %s281 = int_to_ptr.vmem [resolvable:$true] %s280
          %s282 = sshll.u32 %s279, 4
          %286 = dma.hbm_to_vmem [thread:$0]  (%p275), %s278, %s282, %s281, %s262, 512, 512, 32
        $region32: #{tpu_custom_call.1} parent=15 // pred_fallthru
          _
      $region16: #{tpu_custom_call.1} parent=5 // pred_fallthru
        _
      %p287 = scmp.le.s32.totalorder 1, %s22
      %p288 = scmp.lt.s32.totalorder %s22, 10
      %p289 = pnand %p287, %p288
      %p290 = pneg %p289
      // Predicated region
      $region33: #{tpu_custom_call.1} parent=5 // pred_check
        _
      $region34: #{tpu_custom_call.1} parent=5 // pred_check_branch
        %292 = sbr.rel (%p289) target = $region36
      $region35: #{tpu_custom_call.1} parent=5 // pred_region
        %s293 = ssub.s32 %s22, 1
        %s294 = sand.u32 %s35, 1
        %s295 = scalar_lea.sflag [#allocation3], %s294
        %s296 = sand.u32 %s35, 1
        %s297 = smul.addr %s296, 128
        %s298 = scalar_lea.vmem [#allocation2], %s297
        // Predicated region
        $region37: #{tpu_custom_call.1} parent=35 // pred_check
          %p299 = pneg %p48
        $region38: #{tpu_custom_call.1} parent=35 // pred_check_branch
          %301 = sbr.rel (%p299) target = $region40
        $region39: #{tpu_custom_call.1} parent=35 // pred_region
          %302 = dma.done %s295, 2048
        $region40: #{tpu_custom_call.1} parent=35 // pred_fallthru
          _
        %s303 = sand.u32 %s27, 1
        %s304 = scalar_lea.sflag [#allocation6], %s303
        %s305 = sand.u32 %s61, 1
        %s306 = smul.addr %s305, 128
        %s307 = scalar_lea.vmem [#allocation5], %s306
        // Predicated region
        $region41: #{tpu_custom_call.1} parent=35 // pred_check
          %p308 = pneg %p74
        $region42: #{tpu_custom_call.1} parent=35 // pred_check_branch
          %310 = sbr.rel (%p308) target = $region44
        $region43: #{tpu_custom_call.1} parent=35 // pred_region
          %311 = dma.done %s304, 2048
        $region44: #{tpu_custom_call.1} parent=35 // pred_fallthru
          _
        %s312 = sand.u32 %s27, 1
        %s313 = scalar_lea.sflag [#allocation6], %s312
        %s314 = sand.u32 %s87, 1
        %s315 = smul.addr %s314, 128
        %s316 = scalar_lea.vmem [#allocation7], %s315
        // Predicated region
        $region45: #{tpu_custom_call.1} parent=35 // pred_check
          %p317 = pneg %p100
        $region46: #{tpu_custom_call.1} parent=35 // pred_check_branch
          %319 = sbr.rel (%p317) target = $region48
        $region47: #{tpu_custom_call.1} parent=35 // pred_region
          %320 = dma.done %s313, 2048
        $region48: #{tpu_custom_call.1} parent=35 // pred_fallthru
          _
        %s321 = sand.u32 %s113, 1
        %s322 = scalar_lea.sflag [#allocation9], %s321
        %s323 = sand.u32 %s113, 1
        %s324 = smul.addr %s323, 128
        %s325 = scalar_lea.vmem [#allocation8], %s324
        // Predicated region
        $region49: #{tpu_custom_call.1} parent=35 // pred_check
          %p326 = pneg %p126
        $region50: #{tpu_custom_call.1} parent=35 // pred_check_branch
          %328 = sbr.rel (%p326) target = $region52
        $region51: #{tpu_custom_call.1} parent=35 // pred_region
          %329 = dma.done %s322, 2048
        $region52: #{tpu_custom_call.1} parent=35 // pred_fallthru
          _
        %s330 = sand.u32 %s35, 1
        %s331 = scalar_lea.sflag [#allocation3], %s330
        %s332 = sand.u32 %s35, 1
        %s333 = smul.addr %s332, 128
        %s334 = scalar_lea.vmem [#allocation2], %s333
        %p335 = pneg %p48
        %p336 = pneg %p45
        %s337 = sand.u32 %s27, 1
        %s338 = scalar_lea.sflag [#allocation6], %s337
        %s339 = sand.u32 %s61, 1
        %s340 = smul.addr %s339, 128
        %s341 = scalar_lea.vmem [#allocation5], %s340
        %p342 = pneg %p74
        %p343 = pneg %p71
        %s344 = sand.u32 %s27, 1
        %s345 = scalar_lea.sflag [#allocation6], %s344
        %s346 = sand.u32 %s87, 1
        %s347 = smul.addr %s346, 128
        %s348 = scalar_lea.vmem [#allocation7], %s347
        %p349 = pneg %p100
        %p350 = pneg %p97
        %s351 = sand.u32 %s113, 1
        %s352 = scalar_lea.sflag [#allocation9], %s351
        %s353 = sand.u32 %s113, 1
        %s354 = smul.addr %s353, 128
        %s355 = scalar_lea.vmem [#allocation8], %s354
        %p356 = pneg %p126
        %p357 = pneg %p123
        %p358 = pneg %p152
        %p359 = pneg %p149
        %s360 = sand.u32 %s139, 1
        %s361 = scalar_lea.sflag [#allocation4], %s360
        %s362 = sand.u32 %s139, 1
        %s363 = smul.addr %s362, 128
        %s364 = scalar_lea.vmem [#allocation10], %s363
        %s365 = smul.u32 4, %s27
        %s366 = ssub.s32 33, %s365
        %p367 = scmp.lt.s32.totalorder %s366, 4
        %s368 = scalar_select %p367, %s366, 4
        %s369 = smul.u32 128, %s368
        %s370 = smul.u32 %s369, 4
        %s371 = smul.u32 4, %s27
        %s372 = ssub.s32 33, %s371
        %p373 = scmp.lt.s32.totalorder %s372, 4
        %s374 = scalar_select %p373, %s372, 4
        %s375 = smul.u32 128, %s374
        %s376 = smul.u32 %s375, 4
        %s377 = smul.u32 4, %s27
        %s378 = ssub.s32 33, %s377
        %p379 = scmp.lt.s32.totalorder %s378, 4
        %s380 = scalar_select %p379, %s378, 4
        %s381 = smul.u32 128, %s380
        %s382 = smul.u32 %s381, 4
        %s383 = smul.u32 4, %s27
        %s384 = ssub.s32 33, %s383
        %p385 = scmp.lt.s32.totalorder %s384, 4
        %s386 = scalar_select %p385, %s384, 4
        %s387 = smul.u32 128, %s386
        %s388 = smul.u32 %s387, 4
        %s389 = smul.u32 4, %s27
        %s390 = ssub.s32 33, %s389
        %p391 = scmp.lt.s32.totalorder %s390, 4
        %s392 = scalar_select %p391, %s390, 4
        %s393 = smul.u32 128, %s392
        %s394 = smul.u32 %s393, 4
        %v395 = vld [vmem:[%s298] sm:$0xff]
        %v396 = vld [vmem:[%s298 + $0x8] sm:$0xff]
        %v397 = vld [vmem:[%s298 + $0x10] sm:$0xff]
        %v398 = vld [vmem:[%s298 + $0x18] sm:$0xff]
        %v399 = vld [vmem:[%s298 + $0x20] sm:$0xff]
        %v400 = vld [vmem:[%s298 + $0x28] sm:$0xff]
        %v401 = vld [vmem:[%s298 + $0x30] sm:$0xff]
        %v402 = vld [vmem:[%s298 + $0x38] sm:$0xff]
        %v403 = vld [vmem:[%s298 + $0x40] sm:$0xff]
        %v404 = vld [vmem:[%s298 + $0x48] sm:$0xff]
        %v405 = vld [vmem:[%s298 + $0x50] sm:$0xff]
        %v406 = vld [vmem:[%s298 + $0x58] sm:$0xff]
        %v407 = vld [vmem:[%s298 + $0x60] sm:$0xff]
        %v408 = vld [vmem:[%s298 + $0x68] sm:$0xff]
        %v409 = vld [vmem:[%s298 + $0x70] sm:$0xff]
        %v410 = vld [vmem:[%s298 + $0x78] sm:$0xff]
        %v411 = vld [vmem:[%s307] sm:$0xff]
        %v412 = vld [vmem:[%s307 + $0x8] sm:$0xff]
        %v413 = vld [vmem:[%s307 + $0x10] sm:$0xff]
        %v414 = vld [vmem:[%s307 + $0x18] sm:$0xff]
        %v415 = vld [vmem:[%s307 + $0x20] sm:$0xff]
        %v416 = vld [vmem:[%s307 + $0x28] sm:$0xff]
        %v417 = vld [vmem:[%s307 + $0x30] sm:$0xff]
        %v418 = vld [vmem:[%s307 + $0x38] sm:$0xff]
        %v419 = vld [vmem:[%s307 + $0x40] sm:$0xff]
        %v420 = vld [vmem:[%s307 + $0x48] sm:$0xff]
        %v421 = vld [vmem:[%s307 + $0x50] sm:$0xff]
        %v422 = vld [vmem:[%s307 + $0x58] sm:$0xff]
        %v423 = vld [vmem:[%s307 + $0x60] sm:$0xff]
        %v424 = vld [vmem:[%s307 + $0x68] sm:$0xff]
        %v425 = vld [vmem:[%s307 + $0x70] sm:$0xff]
        %v426 = vld [vmem:[%s307 + $0x78] sm:$0xff]
        %v427 = vadd.f32 %v395, %v411
        %v428 = vadd.f32 %v396, %v412
        %v429 = vadd.f32 %v397, %v413
        %v430 = vadd.f32 %v398, %v414
        %v431 = vadd.f32 %v399, %v415
        %v432 = vadd.f32 %v400, %v416
        %v433 = vadd.f32 %v401, %v417
        %v434 = vadd.f32 %v402, %v418
        %v435 = vadd.f32 %v403, %v419
        %v436 = vadd.f32 %v404, %v420
        %v437 = vadd.f32 %v405, %v421
        %v438 = vadd.f32 %v406, %v422
        %v439 = vadd.f32 %v407, %v423
        %v440 = vadd.f32 %v408, %v424
        %v441 = vadd.f32 %v409, %v425
        %v442 = vadd.f32 %v410, %v426
        %v443 = vld [vmem:[%s316] sm:$0xff]
        %v444 = vld [vmem:[%s316 + $0x8] sm:$0xff]
        %v445 = vld [vmem:[%s316 + $0x10] sm:$0xff]
        %v446 = vld [vmem:[%s316 + $0x18] sm:$0xff]
        %v447 = vld [vmem:[%s316 + $0x20] sm:$0xff]
        %v448 = vld [vmem:[%s316 + $0x28] sm:$0xff]
        %v449 = vld [vmem:[%s316 + $0x30] sm:$0xff]
        %v450 = vld [vmem:[%s316 + $0x38] sm:$0xff]
        %v451 = vld [vmem:[%s316 + $0x40] sm:$0xff]
        %v452 = vld [vmem:[%s316 + $0x48] sm:$0xff]
        %v453 = vld [vmem:[%s316 + $0x50] sm:$0xff]
        %v454 = vld [vmem:[%s316 + $0x58] sm:$0xff]
        %v455 = vld [vmem:[%s316 + $0x60] sm:$0xff]
        %v456 = vld [vmem:[%s316 + $0x68] sm:$0xff]
        %v457 = vld [vmem:[%s316 + $0x70] sm:$0xff]
        %v458 = vld [vmem:[%s316 + $0x78] sm:$0xff]
        %v459 = vadd.f32 %v427, %v443
        %v460 = vadd.f32 %v428, %v444
        %v461 = vadd.f32 %v429, %v445
        %v462 = vadd.f32 %v430, %v446
        %v463 = vadd.f32 %v431, %v447
        %v464 = vadd.f32 %v432, %v448
        %v465 = vadd.f32 %v433, %v449
        %v466 = vadd.f32 %v434, %v450
        %v467 = vadd.f32 %v435, %v451
        %v468 = vadd.f32 %v436, %v452
        %v469 = vadd.f32 %v437, %v453
        %v470 = vadd.f32 %v438, %v454
        %v471 = vadd.f32 %v439, %v455
        %v472 = vadd.f32 %v440, %v456
        %v473 = vadd.f32 %v441, %v457
        %v474 = vadd.f32 %v442, %v458
        %v475 = vld [vmem:[%s325] sm:$0xff]
        %v476 = vld [vmem:[%s325 + $0x8] sm:$0xff]
        %v477 = vld [vmem:[%s325 + $0x10] sm:$0xff]
        %v478 = vld [vmem:[%s325 + $0x18] sm:$0xff]
        %v479 = vld [vmem:[%s325 + $0x20] sm:$0xff]
        %v480 = vld [vmem:[%s325 + $0x28] sm:$0xff]
        %v481 = vld [vmem:[%s325 + $0x30] sm:$0xff]
        %v482 = vld [vmem:[%s325 + $0x38] sm:$0xff]
        %v483 = vld [vmem:[%s325 + $0x40] sm:$0xff]
        %v484 = vld [vmem:[%s325 + $0x48] sm:$0xff]
        %v485 = vld [vmem:[%s325 + $0x50] sm:$0xff]
        %v486 = vld [vmem:[%s325 + $0x58] sm:$0xff]
        %v487 = vld [vmem:[%s325 + $0x60] sm:$0xff]
        %v488 = vld [vmem:[%s325 + $0x68] sm:$0xff]
        %v489 = vld [vmem:[%s325 + $0x70] sm:$0xff]
        %v490 = vld [vmem:[%s325 + $0x78] sm:$0xff]
        %v491 = vadd.f32 %v459, %v475
        %v492 = vadd.f32 %v460, %v476
        %v493 = vadd.f32 %v461, %v477
        %v494 = vadd.f32 %v462, %v478
        %v495 = vadd.f32 %v463, %v479
        %v496 = vadd.f32 %v464, %v480
        %v497 = vadd.f32 %v465, %v481
        %v498 = vadd.f32 %v466, %v482
        %v499 = vadd.f32 %v467, %v483
        %v500 = vadd.f32 %v468, %v484
        %v501 = vadd.f32 %v469, %v485
        %v502 = vadd.f32 %v470, %v486
        %v503 = vadd.f32 %v471, %v487
        %v504 = vadd.f32 %v472, %v488
        %v505 = vadd.f32 %v473, %v489
        %v506 = vadd.f32 %v474, %v490
        %507 = vst [vmem:[%s364] sm:$0xff] %v491
        %508 = vst [vmem:[%s364 + $0x8] sm:$0xff] %v492
        %509 = vst [vmem:[%s364 + $0x10] sm:$0xff] %v493
        %510 = vst [vmem:[%s364 + $0x18] sm:$0xff] %v494
        %511 = vst [vmem:[%s364 + $0x20] sm:$0xff] %v495
        %512 = vst [vmem:[%s364 + $0x28] sm:$0xff] %v496
        %513 = vst [vmem:[%s364 + $0x30] sm:$0xff] %v497
        %514 = vst [vmem:[%s364 + $0x38] sm:$0xff] %v498
        %515 = vst [vmem:[%s364 + $0x40] sm:$0xff] %v499
        %516 = vst [vmem:[%s364 + $0x48] sm:$0xff] %v500
        %517 = vst [vmem:[%s364 + $0x50] sm:$0xff] %v501
        %518 = vst [vmem:[%s364 + $0x58] sm:$0xff] %v502
        %519 = vst [vmem:[%s364 + $0x60] sm:$0xff] %v503
        %520 = vst [vmem:[%s364 + $0x68] sm:$0xff] %v504
        %521 = vst [vmem:[%s364 + $0x70] sm:$0xff] %v505
        %522 = vst [vmem:[%s364 + $0x78] sm:$0xff] %v506
        %s523 = sand.u32 %s139, 1
        %s524 = scalar_lea.sflag [#allocation4], %s523
        %s525 = sand.u32 %s139, 1
        %s526 = smul.addr %s525, 128
        %s527 = scalar_lea.vmem [#allocation10], %s526
        // Predicated region
        $region53: #{tpu_custom_call.1} parent=35 // pred_check
          %p528 = pneg %p149
        $region54: #{tpu_custom_call.1} parent=35 // pred_check_branch
          %530 = sbr.rel (%p528) target = $region56
        $region55: #{tpu_custom_call.1} parent=35 // pred_region
          %s531 = smul.u32 4, %s27
          %s532 = ssub.s32 33, %s531
          %p533 = scmp.lt.s32.totalorder %s532, 4
          %s534 = scalar_select %p533, %s532, 4
          %s535 = smul.u32 128, %s534
          %s536 = smul.u32 %s535, 4
          %s538 = ssub.s32 2048, %s536
          %539 = vsyncadd %s524, %s538
          %p540 = scmp.ne.s32.totalorder 0, %s536
          %s541 = smul.addr %s531, 4
          %s542 = smul.addr %s541, 128
          %s543 = scalar_lea.hbm %s4, %s542
          %s544 = smul.u32 32, %s534
          %s545 = sshll.u32 %s527, 4
          %s546 = int_to_ptr.vmem [resolvable:$true] %s545
          %s547 = sshll.u32 %s544, 4
          %551 = dma.vmem_to_hbm [thread:$0]  (%p540), %s546, %s547, %s543, %s524, 512, 512, 32
        $region56: #{tpu_custom_call.1} parent=35 // pred_fallthru
          _
      $region36: #{tpu_custom_call.1} parent=5 // pred_fallthru
        _
      %p552 = scmp.le.s32.totalorder 2, %s22
      // Predicated region
      $region57: #{tpu_custom_call.1} parent=5 // pred_check
        %p553 = pneg %p552
      $region58: #{tpu_custom_call.1} parent=5 // pred_check_branch
        %555 = sbr.rel (%p553) target = $region60
      $region59: #{tpu_custom_call.1} parent=5 // pred_region
        %s556 = ssub.s32 %s22, 2
        // Predicated region
        $region61: #{tpu_custom_call.1} parent=59 // pred_check
          %p557 = pneg %p155
        $region62: #{tpu_custom_call.1} parent=59 // pred_check_branch
          %559 = sbr.rel (%p557) target = $region64
        $region63: #{tpu_custom_call.1} parent=59 // pred_region
          %s560 = sand.u32 %s140, 1
          %s561 = scalar_lea.sflag [#allocation4], %s560
          %s562 = sand.u32 %s140, 1
          %s563 = smul.addr %s562, 128
          %s564 = scalar_lea.vmem [#allocation10], %s563
          %565 = dma.done %s561, 2048
        $region64: #{tpu_custom_call.1} parent=59 // pred_fallthru
          _
      $region60: #{tpu_custom_call.1} parent=5 // pred_fallthru
        _
    $region6: #{tpu_custom_call.1} parent=1 // loop_footer
      %s26 = sadd.s32 1, %s22
    $region7: #{tpu_custom_call.1} parent=1 // loop_footer_branch
      %21 = sbr.rel target = $region3
    $region8: #{tpu_custom_call.1} parent=1 // loop_exit
      _
    %566 = vsyncpa [#allocation3], 1
    %s567 = scalar_lea.sflag [#allocation3], 1
    %568 = vsyncpa %s567, 1
    %569 = vsyncpa [#allocation6], 1
    %s570 = scalar_lea.sflag [#allocation6], 1
    %571 = vsyncpa %s570, 1
    %572 = vsyncpa [#allocation9], 1
    %s573 = scalar_lea.sflag [#allocation9], 1
    %574 = vsyncpa %s573, 1
    %575 = vsyncpa [#allocation4], 1
    %s576 = scalar_lea.sflag [#allocation4], 1
    %577 = vsyncpa %s576, 1

</llo_original>
